<compile_context>
chip_gen: v7x
topology: tpu7x:2x2x1
jax: 0.10.0
libtpu: 0.0.40
codegen_flags: <defaults>
</compile_context>

<pallas_src>
import jax
import jax.numpy as jnp
from jax.experimental import pallas as pl
from jax.experimental.pallas import tpu as pltpu

_LANE = 128                       # TPU lane width (last-dim tile / MXU columns)
_MAX_BATCH_TILE = 4096            # upper bound on rows per grid step
_VMEM_LIMIT = 32 * 1024 * 1024    # explicit scoped-VMEM limit (portable v5e/v6e/v7x)


def _round_up(x, m):
    return (x + m - 1) // m * m


def _num_tensorcores():
    # v5e/v6e: 1 TC per chip; v7x: 2 TCs.  Used only for tiling heuristics.
    try:
        return max(1, int(getattr(jax.devices()[0], "num_cores", 1)))
    except Exception:
        return 1


def _receiver_kernel(x_ref, w1_ref, b1_ref, w2_ref, b2_ref, out_ref):
    # Fully fused MLP on one VMEM-resident tile:
    #   MXU matmul (f32 acc) -> VPU bias + leaky_relu (f32) -> MXU matmul -> store.
    # The hidden dim is lane-padded (Fp = 128-multiple) so the first matmul and
    # the leaky_relu are full-width; the second matmul contracts over Fp and
    # produces the narrow logical F columns, which are stored directly (no
    # output padding, no post-call slice).
    x = x_ref[...].astype(w1_ref.dtype)        # bf16 cast only in bf16-weight mode
    h = jnp.dot(x, w1_ref[...], preferred_element_type=jnp.float32)
    h = h + b1_ref[...].astype(jnp.float32)
    h = jnp.where(h > 0, h, jnp.float32(0.01) * h)            # leaky_relu, in f32
    y = jnp.dot(h.astype(w2_ref.dtype), w2_ref[...],
                preferred_element_type=jnp.float32)
    y = y + b2_ref[...].astype(jnp.float32)
    out_ref[...] = y.astype(out_ref.dtype)


def init_receiver_params(key, n_hidden, n_features):
    """nn.Linear-style init U(-1/sqrt(fan_in), 1/sqrt(fan_in)).
    Weights stored as (in_features, out_features) = transpose of PyTorch's (out, in)."""
    k1, k2, k3, k4 = jax.random.split(key, 4)
    lim1 = 1.0 / jnp.sqrt(jnp.float32(n_hidden))
    lim2 = 1.0 / jnp.sqrt(jnp.float32(n_features))
    return {
        "w1": jax.random.uniform(k1, (n_hidden, n_features), jnp.float32, -lim1, lim1),
        "b1": jax.random.uniform(k2, (n_features,), jnp.float32, -lim1, lim1),
        "w2": jax.random.uniform(k3, (n_features, n_features), jnp.float32, -lim2, lim2),
        "b2": jax.random.uniform(k4, (n_features,), jnp.float32, -lim2, lim2),
    }


def prepare_receiver_params(params, weight_dtype=jnp.float32):
    """One-time layout prep.

    * w1/b1: hidden (output-of-fc1) dim padded to a multiple of 128 lanes so the
      first matmul + leaky_relu are lane-dense.  Padded columns are zero.
    * w2: padded only on its contraction (row) dim to match the padded hidden;
      its column dim stays at the logical F so the kernel's output is (tb, F)
      and no output padding / post-call slice is needed.  Padded rows are zero.
    * b2: kept at (1, F).
    """
    w1, b1, w2, b2 = params["w1"], params["b1"], params["w2"], params["b2"]
    H, F = w1.shape
    Fp = _round_up(F, _LANE)
    pf = Fp - F
    return {
        "w1": jnp.pad(w1, ((0, 0), (0, pf))).astype(weight_dtype),
        "b1": jnp.pad(b1.reshape(1, F), ((0, 0), (0, pf))).astype(weight_dtype),
        "w2": jnp.pad(w2, ((0, pf), (0, 0))).astype(weight_dtype),   # (Fp, F)
        "b2": b2.reshape(1, F).astype(weight_dtype),                 # (1, F)
    }


def make_receiver(params, weight_dtype=jnp.float32, out_dtype=None):
    """Returns a jitted forward(x) implementing Receiver.forward(input, _).

    weight_dtype: storage dtype for the weights (bf16 is MXU-native on v6e/v7x).
                  NOTE: in bf16 mode activations are also quantized to bf16 at
                  each matmul input (f32 accumulation is kept throughout).
    out_dtype:    output dtype (defaults to the input dtype); bf16 halves output
                  writeback on the batched path if downstream tolerates it.
    """
    H, F = params["w1"].shape
    padded = prepare_receiver_params(params, weight_dtype)
    Fp = padded["w1"].shape[1]
    w1, b1, w2, b2 = padded["w1"], padded["b1"], padded["w2"], padded["b2"]

    num_cores = _num_tensorcores()
    # Gridless (single VMEM block, single TC) path threshold: keep it high on
    # 1-TC chips (a grid only adds overhead), lower on v7x so mid-size batches
    # get split across both TensorCores.
    gridless_max = 1024 if num_cores <= 1 else 256

    def _call(x2d):
        B = x2d.shape[0]
        odt = out_dtype if out_dtype is not None else x2d.dtype
        if B <= gridless_max:
            # Single block, everything resident in VMEM: no grid, no pipeline,
            # no double buffers.
            return pl.pallas_call(
                _receiver_kernel,
                out_shape=jax.ShapeDtypeStruct((B, F), odt),
                in_specs=[pl.BlockSpec(memory_space=pltpu.MemorySpace.VMEM)] * 5,
                out_specs=pl.BlockSpec(memory_space=pltpu.MemorySpace.VMEM),
                compiler_params=pltpu.CompilerParams(vmem_limit_bytes=_VMEM_LIMIT),
            )(x2d, w1, b1, w2, b2)

        # Batched path: tile over rows, 'parallel' so v7x's 2 TCs split the batch.
        # Clamp the tile so there are at least `num_cores` grid steps (otherwise a
        # single-step grid would leave the second TC idle on v7x), but never
        # smaller than the 8-row sublane granule.
        tb = min(_MAX_BATCH_TILE, _round_up(pl.cdiv(B, num_cores), 8))
        tb = max(tb, 8)
        # When B % tb != 0 the final partial block computes on padded/out-of-bounds
        # rows; rows are independent so the valid outputs are unaffected.  Do not
        # introduce cross-row reductions here without masking that block.
        return pl.pallas_call(
            _receiver_kernel,
            out_shape=jax.ShapeDtypeStruct((B, F), odt),
            grid=(pl.cdiv(B, tb),),
            in_specs=[
                pl.BlockSpec((tb, H), lambda i: (i, 0)),    # H=32 deliberately unpadded
                pl.BlockSpec((H, Fp), lambda i: (0, 0)),
                pl.BlockSpec((1, Fp), lambda i: (0, 0)),
                pl.BlockSpec((Fp, F), lambda i: (0, 0)),
                pl.BlockSpec((1, F), lambda i: (0, 0)),
            ],
            out_specs=pl.BlockSpec((tb, F), lambda i: (i, 0)),
            compiler_params=pltpu.CompilerParams(
                dimension_semantics=("parallel",),
                vmem_limit_bytes=_VMEM_LIMIT),
        )(x2d, w1, b1, w2, b2)

    @jax.jit
    def forward(x):
        # Fold all leading dims into one batch so one pallas_call amortizes the
        # fixed per-call overhead (this kernel is overhead-bound at tiny shapes).
        lead = x.shape[:-1]
        x2d = x.reshape((-1, H))
        y = _call(x2d).reshape(lead + (F,))
        # torch .squeeze(dim=0): drop leading axis only if it has size 1.
        if y.ndim >= 1 and y.shape[0] == 1:
            y = y[0]
        return y

    return forward


def _reference(x, params, weight_dtype=jnp.float32):
    """Pure-JAX reference mirroring the kernel's dtype semantics (in bf16 mode
    both weights and activations are quantized, f32 accumulation)."""
    w1 = params["w1"].astype(weight_dtype)
    b1 = params["b1"].astype(weight_dtype).astype(jnp.float32)
    w2 = params["w2"].astype(weight_dtype)
    b2 = params["b2"].astype(weight_dtype).astype(jnp.float32)
    h = jnp.dot(x.astype(weight_dtype), w1, preferred_element_type=jnp.float32) + b1
    h = jnp.where(h > 0, h, 0.01 * h)
    y = jnp.dot(h.astype(weight_dtype), w2, preferred_element_type=jnp.float32) + b2
    y = y.astype(x.dtype)
    return y[0] if y.shape[0] == 1 else y


if __name__ == "__main__":
    n_hidden, n_features = 32, 16
    key = jax.random.PRNGKey(0)
    kx, kp, kb = jax.random.split(key, 3)
    params = init_receiver_params(kp, n_hidden, n_features)

    # 1) Module-spec shapes (B=2): f32 weights, grid-less single-block path.
    x_small = jax.random.normal(kx, (2, n_hidden), jnp.float32)
    fwd_f32 = make_receiver(params, weight_dtype=jnp.float32)
    out = jax.block_until_ready(fwd_f32(x_small))
    ref = _reference(x_small, params)
    assert out.shape == ref.shape, (out.shape, ref.shape)
    assert jnp.allclose(out, ref, atol=1e-5, rtol=1e-5)

    # 2) squeeze(dim=0) semantics (B=1).
    out1 = jax.block_until_ready(fwd_f32(x_small[:1]))
    ref1 = _reference(x_small[:1], params)
    assert out1.shape == ref1.shape == (n_features,)
    assert jnp.allclose(out1, ref1, atol=1e-5, rtol=1e-5)

    # 3) Many Receiver invocations folded into one call: batch-tiled, parallel
    #    grid, narrow (unpadded) output.
    x_big = jax.random.normal(kb, (4096, n_hidden), jnp.float32)
    out_big = jax.block_until_ready(fwd_f32(x_big))
    ref_big = _reference(x_big, params)
    assert out_big.shape == ref_big.shape
    assert jnp.allclose(out_big, ref_big, atol=1e-4, rtol=1e-4)

    # 4) bf16 weight storage (MXU-native on v6e/v7x) with f32 accumulation.
    #    Activations are also quantized to bf16 at the matmul inputs (documented);
    #    the reference mirrors this.
    fwd_bf16 = make_receiver(params, weight_dtype=jnp.bfloat16)
    out_bf = jax.block_until_ready(fwd_bf16(x_small))
    ref_bf = _reference(x_small, params, weight_dtype=jnp.bfloat16)
    assert out_bf.shape == ref_bf.shape
    assert jnp.allclose(out_bf, ref_bf, atol=2e-2, rtol=2e-2)

    # TODO(synk): fp8 weight-storage option for v7x (MXU bf16+fp8) left out; only
    # relevant if this MLP is scaled up or called with resident weights.

    print("KERNEL_OK")
</pallas_src>

<mosaic_0001>
module attributes {stable_mosaic.version = 11 : i64} {
  func.func @_receiver_kernel(%arg0: memref<2x32xf32, #tpu.memory_space<vmem>>, %arg1: memref<32x128xf32, #tpu.memory_space<vmem>>, %arg2: memref<1x128xf32, #tpu.memory_space<vmem>>, %arg3: memref<128x16xf32, #tpu.memory_space<vmem>>, %arg4: memref<1x16xf32, #tpu.memory_space<vmem>>, %arg5: memref<2x16xf32, #tpu.memory_space<vmem>>) attributes {dimension_semantics = [], scalar_prefetch = 0 : i64, scratch_operands = 0 : i64, tpu.core_type = #tpu.core_type<tc>} {
    %c0 = arith.constant 0 : index
    %c0_0 = arith.constant 0 : index
    %0 = vector.load %arg0[%c0, %c0_0] : memref<2x32xf32, #tpu.memory_space<vmem>>, vector<2x32xf32>
    %c0_1 = arith.constant 0 : index
    %c0_2 = arith.constant 0 : index
    %1 = vector.load %arg1[%c0_1, %c0_2] : memref<32x128xf32, #tpu.memory_space<vmem>>, vector<32x128xf32>
    %cst = arith.constant dense<0.000000e+00> : vector<2x128xf32>
    %2 = tpu.matmul %0, %1, %cst {dimension_numbers = #tpu.dot_dimension_numbers<[1], [0], [0], [1], [0, 0, 1, 1], [], []>} : vector<2x32xf32>, vector<32x128xf32>, vector<2x128xf32> -> vector<2x128xf32>
    %c0_3 = arith.constant 0 : index
    %c0_4 = arith.constant 0 : index
    %3 = vector.load %arg2[%c0_3, %c0_4] : memref<1x128xf32, #tpu.memory_space<vmem>>, vector<1x128xf32>
    %4 = vector.broadcast %3 : vector<1x128xf32> to vector<2x128xf32>
    %5 = arith.addf %2, %4 : vector<2x128xf32>
    %cst_5 = arith.constant 0.000000e+00 : f32
    %6 = vector.broadcast %cst_5 : f32 to vector<2x128xf32>
    %7 = arith.cmpf ogt, %5, %6 : vector<2x128xf32>
    %cst_6 = arith.constant 0.00999999977 : f32
    %8 = vector.broadcast %cst_6 : f32 to vector<2x128xf32>
    %9 = arith.mulf %8, %5 : vector<2x128xf32>
    %10 = arith.select %7, %5, %9 : vector<2x128xi1>, vector<2x128xf32>
    %c0_7 = arith.constant 0 : index
    %c0_8 = arith.constant 0 : index
    %11 = vector.load %arg3[%c0_7, %c0_8] : memref<128x16xf32, #tpu.memory_space<vmem>>, vector<128x16xf32>
    %cst_9 = arith.constant dense<0.000000e+00> : vector<2x16xf32>
    %12 = tpu.matmul %10, %11, %cst_9 {dimension_numbers = #tpu.dot_dimension_numbers<[1], [0], [0], [1], [0, 0, 1, 1], [], []>} : vector<2x128xf32>, vector<128x16xf32>, vector<2x16xf32> -> vector<2x16xf32>
    %c0_10 = arith.constant 0 : index
    %c0_11 = arith.constant 0 : index
    %13 = vector.load %arg4[%c0_10, %c0_11] : memref<1x16xf32, #tpu.memory_space<vmem>>, vector<1x16xf32>
    %14 = vector.broadcast %13 : vector<1x16xf32> to vector<2x16xf32>
    %15 = arith.addf %12, %14 : vector<2x16xf32>
    %c0_12 = arith.constant 0 : index
    %c0_13 = arith.constant 0 : index
    %16 = vector.load %arg5[%c0_12, %c0_13] : memref<2x16xf32, #tpu.memory_space<vmem>>, vector<2x16xf32>
    tpu.vector_store %arg5[%c0_12, %c0_13], %15 {strides = array<i32>} : memref<2x16xf32, #tpu.memory_space<vmem>>, vector<2x16xf32>,
    return
  }
}

</mosaic_0001>

<llo_original>
// kernel: forward.1
$region0: #{forward.1}
  #allocation0 [shape = 'u32[]', space=smem, size = 0x4, offset = 0x4, fixed_abs, tag = 'smem constant byte address 0x4 - core index']
  #allocation1 [shape = 'u32[144,128]{1,0:T(1,128)}', space=vmem, size = 0x12000, scoped, tag = 'internal scratch']
  %s0 = inlined_call_operand.hbm [shape: f32[2,32], index: 0, kind: input, shape index: {}]
  %s1 = inlined_call_operand.hbm [shape: f32[32,128], index: 1, kind: input, shape index: {}]
  %s2 = inlined_call_operand.vmem [shape: f32[1,128], index: 2, kind: input, shape index: {}]
  %s3 = inlined_call_operand.hbm [shape: f32[128,16], index: 3, kind: input, shape index: {}]
  %s4 = inlined_call_operand.vmem [shape: f32[1,16], index: 4, kind: input, shape index: {}]
  %s5 = inlined_call_operand.hbm [shape: f32[2,16], index: 5, kind: output, shape index: {}]
  %s6 = sld [smem:[#allocation0]]
  $region42: #{forward.1} parent=0
    _
  %s8 = ssub.s32 1, %s6
  %s9 = scalar_select 0, %s8, %s6
  $region1: #{forward.1} parent=0
    #allocation2 [shape = 'u8[1024]{0}', space=vmem, size = 0x400, scoped, tag = 'input window, operand 0, single buffered']
    #allocation3 [shape = 's32[1]{0}', space=sflag, size = 0x4, scoped, tag = 'scoped memory for forward.1']
    #allocation4 [shape = 's32[1]{0}', space=sflag, size = 0x4, scoped, tag = 'scoped memory for forward.1']
    #allocation5 [shape = 'u8[16384]{0}', space=vmem, size = 0x4000, scoped, tag = 'input window, operand 1, single buffered']
    #allocation6 [shape = 's32[1]{0}', space=sflag, size = 0x4, scoped, tag = 'scoped memory for forward.1']
    #allocation7 [shape = 'u8[65536]{0}', space=vmem, size = 0x10000, scoped, tag = 'input window, operand 3, single buffered']
    #allocation8 [shape = 'u8[1024]{0}', space=vmem, size = 0x400, scoped, tag = 'output window, operand 0, single buffered']
    %10 = vsyncpa [#allocation3], 0
    %11 = vsyncpa [#allocation6], 0
    %12 = vsyncpa [#allocation4], 0
    // Predicated region
    $region2: #{forward.1} parent=1 // pred_check
      _
    $region3: #{forward.1} parent=1 // pred_check_branch
      %14 = sbr.rel (0) target = $region5
    $region4: #{forward.1} parent=1 // pred_region
      %s16 = ssub.s32 32, 32
      %17 = vsyncadd [#allocation3], %s16
      %s19 = sshll.u32 [#allocation2], 4
      %s20 = int_to_ptr.vmem [resolvable:$true] %s19
      %22 = dma.hbm_to_vmem [thread:$0]  %s0, 32, %s20, [#allocation3]
    $region5: #{forward.1} parent=1 // pred_fallthru
      _
    // Predicated region
    $region6: #{forward.1} parent=1 // pred_check
      _
    $region7: #{forward.1} parent=1 // pred_check_branch
      %24 = sbr.rel (0) target = $region9
    $region8: #{forward.1} parent=1 // pred_region
      %s26 = ssub.s32 512, 512
      %27 = vsyncadd [#allocation6], %s26
      %s28 = sshll.u32 [#allocation5], 4
      %s29 = int_to_ptr.vmem [resolvable:$true] %s28
      %34 = dma.hbm_to_vmem [thread:$0]  %s1, 512, %s29, [#allocation6], 128, 128, 8
    $region9: #{forward.1} parent=1 // pred_fallthru
      _
    // Predicated region
    $region10: #{forward.1} parent=1 // pred_check
      _
    $region11: #{forward.1} parent=1 // pred_check_branch
      %36 = sbr.rel (0) target = $region13
    $region12: #{forward.1} parent=1 // pred_region
      _
    $region13: #{forward.1} parent=1 // pred_fallthru
      _
    // Predicated region
    $region14: #{forward.1} parent=1 // pred_check
      _
    $region15: #{forward.1} parent=1 // pred_check_branch
      %38 = sbr.rel (0) target = $region17
    $region16: #{forward.1} parent=1 // pred_region
      %s40 = ssub.s32 2048, 2048
      %41 = vsyncadd [#allocation6], %s40
      %s42 = sshll.u32 [#allocation7], 4
      %s43 = int_to_ptr.vmem [resolvable:$true] %s42
      %48 = dma.hbm_to_vmem [thread:$0]  %s3, 2048, %s43, [#allocation6], 128, 128, 8
    $region17: #{forward.1} parent=1 // pred_fallthru
      _
    // Predicated region
    $region18: #{forward.1} parent=1 // pred_check
      _
    $region19: #{forward.1} parent=1 // pred_check_branch
      %50 = sbr.rel (0) target = $region21
    $region20: #{forward.1} parent=1 // pred_region
      _
    $region21: #{forward.1} parent=1 // pred_fallthru
      _
    // Predicated region
    $region22: #{forward.1} parent=1 // pred_check
      _
    $region23: #{forward.1} parent=1 // pred_check_branch
      %52 = sbr.rel (0) target = $region25
    $region24: #{forward.1} parent=1 // pred_region
      %53 = dma.done [#allocation3], 32
    $region25: #{forward.1} parent=1 // pred_fallthru
      _
    // Predicated region
    $region26: #{forward.1} parent=1 // pred_check
      _
    $region27: #{forward.1} parent=1 // pred_check_branch
      %55 = sbr.rel (0) target = $region29
    $region28: #{forward.1} parent=1 // pred_region
      %56 = dma.done [#allocation6], 512
    $region29: #{forward.1} parent=1 // pred_fallthru
      _
    // Predicated region
    $region30: #{forward.1} parent=1 // pred_check
      _
    $region31: #{forward.1} parent=1 // pred_check_branch
      %58 = sbr.rel (0) target = $region33
    $region32: #{forward.1} parent=1 // pred_region
      %59 = dma.done [#allocation6], 2048
    $region33: #{forward.1} parent=1 // pred_fallthru
      _
    %v60 = vld [vmem:[#allocation2] sm:$0x3]
    %v61 = vld [vmem:[#allocation5] sm:$0xff]
    %v62 = vld [vmem:[#allocation5 + $0x8] sm:$0xff]
    %v63 = vld [vmem:[#allocation5 + $0x10] sm:$0xff]
    %v64 = vld [vmem:[#allocation5 + $0x18] sm:$0xff]
    %v65 = vld [vmem:[%s2] sm:$0x1]
    %v67 = vlaneseq
    %v68 = vshrl.u32 %v67, 7
    %v69 = vsub.s32 0, %v68
    %v70 = vrot.slane %v65, %v69
    %vm72 = vcmask 261120
    %v74 = vsel %vm72, %v60, 0
    %76 = vmatprep.subr.mxu0 0.0
    %77 = vmatpush1.msra.mxu0 %v61
    %78 = vmatprep.subr.mxu0 0.0
    %79 = vmatpush1.msra.mxu0 %v62
    %80 = vmatprep.subr.mxu0 0.0
    %81 = vmatpush1.msra.mxu0 %v63
    %82 = vmatprep.subr.mxu0 0.0
    %83 = vmatpush1.msra.mxu0 %v64
    %84 = vmatprep.subr.mxu0 0.0
    %85 = vmatpush1.msra.mxu0 0.0
    %86 = vmatprep.subr.mxu0 0.0
    %87 = vmatpush1.msra.mxu0 0.0
    %88 = vmatprep.subr.mxu0 0.0
    %89 = vmatpush1.msra.mxu0 0.0
    %90 = vmatprep.subr.mxu0 0.0
    %91 = vmatpush1.msra.mxu0 0.0
    %92 = vmatprep.subr.mxu0 0.0
    %93 = vmatpush1.msra.mxu0 0.0
    %94 = vmatprep.subr.mxu0 0.0
    %95 = vmatpush1.msra.mxu0 0.0
    %96 = vmatprep.subr.mxu0 0.0
    %97 = vmatpush1.msra.mxu0 0.0
    %98 = vmatprep.subr.mxu0 0.0
    %99 = vmatpush1.msra.mxu0 0.0
    %100 = vmatprep.subr.mxu0 0.0
    %101 = vmatpush1.msra.mxu0 0.0
    %102 = vmatprep.subr.mxu0 0.0
    %103 = vmatpush1.msra.mxu0 0.0
    %104 = vmatprep.subr.mxu0 0.0
    %105 = vmatpush1.msra.mxu0 0.0
    %106 = vmatprep.subr.mxu0 0.0
    %107 = vmatpush1.msra.mxu0 0.0
    %108 = vmatprep.subr.mxu0 0.0
    %109 = vmatpush1.msra.mxu0 0.0
    %110 = vmatprep.subr.mxu0 0.0
    %111 = vmatpush1.msra.mxu0 0.0
    %112 = vmatprep.subr.mxu0 0.0
    %113 = vmatpush1.msra.mxu0 0.0
    %114 = vmatprep.subr.mxu0 0.0
    %115 = vmatpush1.msra.mxu0 0.0
    %116 = vmatprep.subr.mxu0 0.0
    %117 = vmatpush1.msra.mxu0 0.0
    %118 = vmatprep.subr.mxu0 0.0
    %119 = vmatpush1.msra.mxu0 0.0
    %120 = vmatprep.subr.mxu0 0.0
    %121 = vmatpush1.msra.mxu0 0.0
    %122 = vmatprep.subr.mxu0 0.0
    %123 = vmatpush1.msra.mxu0 0.0
    %124 = vmatprep.subr.mxu0 0.0
    %125 = vmatpush1.msra.mxu0 0.0
    %126 = vmatprep.subr.mxu0 0.0
    %127 = vmatpush1.msra.mxu0 0.0
    %128 = vmatprep.subr.mxu0 0.0
    %129 = vmatpush1.msra.mxu0 0.0
    %130 = vmatprep.subr.mxu0 0.0
    %131 = vmatpush1.msra.mxu0 0.0
    %132 = vmatprep.subr.mxu0 0.0
    %133 = vmatpush1.msra.mxu0 0.0
    %134 = vmatprep.subr.mxu0 0.0
    %135 = vmatpush1.msra.mxu0 0.0
    %136 = vmatprep.subr.mxu0 0.0
    %137 = vmatpush1.msra.mxu0 0.0
    %138 = vmatprep.subr.mxu0 0.0
    %139 = vmatpush1.msra.mxu0 0.0
    %140 = vmatprep.mubr.f32.mxu0 0.0
    %141 = vmatmul.mubr.f32.gmra.mrb[0].mxu0 %v74
    %v142 = vpop.f32.mrb[0].mxu0
    %v143 = vadd.f32 %v70, %v142
    %v144 = vpop.f32.mrb[0].mxu0
    %145 = vdwg.mxu0
    %vm146 = vcmp.gt.f32.partialorder %v143, 0.0
    %v147 = vmul.f32 %v143, 0.01
    %v148 = vsel %vm146, %v143, %v147
    %v149 = vld [vmem:[#allocation7] sm:$0xff]
    %v150 = vld [vmem:[#allocation7 + $0x8] sm:$0xff]
    %v151 = vld [vmem:[#allocation7 + $0x10] sm:$0xff]
    %v152 = vld [vmem:[#allocation7 + $0x18] sm:$0xff]
    %v153 = vld [vmem:[#allocation7 + $0x20] sm:$0xff]
    %v154 = vld [vmem:[#allocation7 + $0x28] sm:$0xff]
    %v155 = vld [vmem:[#allocation7 + $0x30] sm:$0xff]
    %v156 = vld [vmem:[#allocation7 + $0x38] sm:$0xff]
    %v157 = vld [vmem:[#allocation7 + $0x40] sm:$0xff]
    %v158 = vld [vmem:[#allocation7 + $0x48] sm:$0xff]
    %v159 = vld [vmem:[#allocation7 + $0x50] sm:$0xff]
    %v160 = vld [vmem:[#allocation7 + $0x58] sm:$0xff]
    %v161 = vld [vmem:[#allocation7 + $0x60] sm:$0xff]
    %v162 = vld [vmem:[#allocation7 + $0x68] sm:$0xff]
    %v163 = vld [vmem:[#allocation7 + $0x70] sm:$0xff]
    %v164 = vld [vmem:[#allocation7 + $0x78] sm:$0xff]
    %v165 = vld [vmem:[%s4] sm:$0x1]
    %v167 = vlaneseq
    %v168 = vshrl.u32 %v167, 7
    %v169 = vsub.s32 0, %v168
    %v170 = vrot.slane %v165, %v169
    %172 = vmatprep.subr.mxu0 0.0
    %173 = vmatpush1.msra.mxu0 %v149
    %174 = vmatprep.subr.mxu0 0.0
    %175 = vmatpush1.msra.mxu0 %v150
    %176 = vmatprep.subr.mxu0 0.0
    %177 = vmatpush1.msra.mxu0 %v151
    %178 = vmatprep.subr.mxu0 0.0
    %179 = vmatpush1.msra.mxu0 %v152
    %180 = vmatprep.subr.mxu0 0.0
    %181 = vmatpush1.msra.mxu0 %v153
    %182 = vmatprep.subr.mxu0 0.0
    %183 = vmatpush1.msra.mxu0 %v154
    %184 = vmatprep.subr.mxu0 0.0
    %185 = vmatpush1.msra.mxu0 %v155
    %186 = vmatprep.subr.mxu0 0.0
    %187 = vmatpush1.msra.mxu0 %v156
    %188 = vmatprep.subr.mxu0 0.0
    %189 = vmatpush1.msra.mxu0 %v157
    %190 = vmatprep.subr.mxu0 0.0
    %191 = vmatpush1.msra.mxu0 %v158
    %192 = vmatprep.subr.mxu0 0.0
    %193 = vmatpush1.msra.mxu0 %v159
    %194 = vmatprep.subr.mxu0 0.0
    %195 = vmatpush1.msra.mxu0 %v160
    %196 = vmatprep.subr.mxu0 0.0
    %197 = vmatpush1.msra.mxu0 %v161
    %198 = vmatprep.subr.mxu0 0.0
    %199 = vmatpush1.msra.mxu0 %v162
    %200 = vmatprep.subr.mxu0 0.0
    %201 = vmatpush1.msra.mxu0 %v163
    %202 = vmatprep.subr.mxu0 0.0
    %203 = vmatpush1.msra.mxu0 %v164
    %204 = vmatprep.subr.mxu0 0.0
    %205 = vmatpush1.msra.mxu0 0.0
    %206 = vmatprep.subr.mxu0 0.0
    %207 = vmatpush1.msra.mxu0 0.0
    %208 = vmatprep.subr.mxu0 0.0
    %209 = vmatpush1.msra.mxu0 0.0
    %210 = vmatprep.subr.mxu0 0.0
    %211 = vmatpush1.msra.mxu0 0.0
    %212 = vmatprep.subr.mxu0 0.0
    %213 = vmatpush1.msra.mxu0 0.0
    %214 = vmatprep.subr.mxu0 0.0
    %215 = vmatpush1.msra.mxu0 0.0
    %216 = vmatprep.subr.mxu0 0.0
    %217 = vmatpush1.msra.mxu0 0.0
    %218 = vmatprep.subr.mxu0 0.0
    %219 = vmatpush1.msra.mxu0 0.0
    %220 = vmatprep.subr.mxu0 0.0
    %221 = vmatpush1.msra.mxu0 0.0
    %222 = vmatprep.subr.mxu0 0.0
    %223 = vmatpush1.msra.mxu0 0.0
    %224 = vmatprep.subr.mxu0 0.0
    %225 = vmatpush1.msra.mxu0 0.0
    %226 = vmatprep.subr.mxu0 0.0
    %227 = vmatpush1.msra.mxu0 0.0
    %228 = vmatprep.subr.mxu0 0.0
    %229 = vmatpush1.msra.mxu0 0.0
    %230 = vmatprep.subr.mxu0 0.0
    %231 = vmatpush1.msra.mxu0 0.0
    %232 = vmatprep.subr.mxu0 0.0
    %233 = vmatpush1.msra.mxu0 0.0
    %234 = vmatprep.subr.mxu0 0.0
    %235 = vmatpush1.msra.mxu0 0.0
    %236 = vmatprep.mubr.f32.mxu0 0.0
    %237 = vmatmul.mubr.f32.gmra.mrb[0].mxu0 %v148
    %v238 = vpop.f32.mrb[0].mxu0
    %v239 = vadd.f32 %v170, %v238
    %v240 = vpop.f32.mrb[0].mxu0
    %241 = vdwg.mxu0
    %vm242 = vcmask 123904
    %243 = vst.msk [vmem:[#allocation8] sm:$0x3] %vm242, %v239
    // Predicated region
    $region34: #{forward.1} parent=1 // pred_check
      _
    $region35: #{forward.1} parent=1 // pred_check_branch
      %245 = sbr.rel (0) target = $region37
    $region36: #{forward.1} parent=1 // pred_region
      %s247 = ssub.s32 32, 32
      %248 = vsyncadd [#allocation4], %s247
      %s250 = sshll.u32 [#allocation8], 4
      %s251 = int_to_ptr.vmem [resolvable:$true] %s250
      %253 = dma.vmem_to_hbm [thread:$0]  %s251, 32, %s5, [#allocation4]
    $region37: #{forward.1} parent=1 // pred_fallthru
      _
    // Predicated region
    $region38: #{forward.1} parent=1 // pred_check
      _
    $region39: #{forward.1} parent=1 // pred_check_branch
      %255 = sbr.rel (0) target = $region41
    $region40: #{forward.1} parent=1 // pred_region
      %256 = dma.done [#allocation4], 32
    $region41: #{forward.1} parent=1 // pred_fallthru
      _
    %257 = vsyncpa [#allocation3], 1
    %258 = vsyncpa [#allocation6], 1
    %259 = vsyncpa [#allocation4], 1

</llo_original>
